<compile_context>
chip_gen: v7x
topology: tpu7x:2x2x1
jax: 0.10.0
libtpu: 0.0.40
codegen_flags: <defaults>
</compile_context>

<pallas_src>
import jax
import jax.numpy as jnp
from jax import lax
from jax.experimental import pallas as pl
from jax.experimental.pallas import tpu as pltpu


def unit_kernel(x_ref, w1_ref, b1_ref, wf_ref, bf_ref, o_ref):
    # x_ref : (1, H+2, W+2, Cin) bf16 -- replication-padded NHWC tile, one batch elem
    # w1_ref: (C1, 9*Cin)        bf16 -- 3x3 conv weights with BN scale folded, channels-first
    # b1_ref: (C1, 1)            f32  -- conv1 bias + BN offset folded
    # wf_ref: (Cout, C1)         bf16 -- fused (wc @ wo)^T  (core 1x1 + out 1x1 convs)
    # bf_ref: (Cout, 1)          f32  -- fused bias (bc @ wo + bo)^T
    # o_ref : (1, Cout, HW)      f32  -- channels-first output (maps straight to NCHW)
    Hp, Wp, Cin = x_ref.shape[1], x_ref.shape[2], x_ref.shape[3]
    H, W = Hp - 2, Wp - 2
    HW = H * W

    xp = x_ref[0]                                                  # (Hp, Wp, Cin)

    # In-kernel im2col: 9 shifted taps concatenated along the channel (lane) axis,
    # then collapse the leading spatial dims (minor dim preserved -> cheap reshape).
    taps = [xp[dy:dy + H, dx:dx + W, :] for dy in range(3) for dx in range(3)]
    xim = jnp.concatenate(taps, axis=2).reshape(HW, 9 * Cin)       # (HW, 9*Cin) bf16

    # 3x3 conv (+ folded bias/BN) as a single MXU matmul, channels-first result (C1, HW).
    h = lax.dot_general(w1_ref[...], xim,
                        dimension_numbers=(((1,), (1,)), ((), ())),
                        preferred_element_type=jnp.float32)        # (C1, HW)
    h = jnp.maximum(h + b1_ref[...], 0.0)                          # BN/bias + ReLU
    h = h.astype(jnp.bfloat16)

    # core 1x1 conv + out 1x1 conv fused into one matmul (exact: no nonlinearity between).
    out = jnp.dot(wf_ref[...], h, preferred_element_type=jnp.float32)   # (Cout, HW)
    out = jnp.maximum(out + bf_ref[...], 0.0)                      # bias + ReLU
    o_ref[0] = out.astype(o_ref.dtype)


def unit_forward(x_nchw, params):
    """Pallas forward pass. x_nchw: (N, Cin, H, W) -> (N, Cout, H, W)."""
    w1, b1, bn_s, bn_b, wc, bc, wo, bo = params
    N, Cin, H, W = x_nchw.shape
    HW = H * W
    C1 = w1.shape[-1]
    Cout = wo.shape[-1]

    # ---- tiny one-time glue in XLA ------------------------------------------------
    # NCHW -> NHWC + ReplicationPad2d(1); only the padded tile is shipped to the kernel.
    x = jnp.transpose(x_nchw, (0, 2, 3, 1))
    x_pad = jnp.pad(x, ((0, 0), (1, 1), (1, 1), (0, 0)), mode='edge')
    x_pad = x_pad.astype(jnp.bfloat16)

    # Fold BatchNorm (eval) into the 3x3 conv; channels-first weight layout.
    w1f = (w1 * bn_s[0]).reshape(9 * Cin, C1).T.astype(jnp.bfloat16)      # (C1, 9*Cin)
    b1f = (b1 * bn_s + bn_b).reshape(C1, 1).astype(jnp.float32)           # (C1, 1)

    # Fuse the two linear 1x1 convs (core + out_block).
    wf = (wc @ wo).T.astype(jnp.bfloat16)                                 # (Cout, C1)
    bff = (bc @ wo + bo).reshape(Cout, 1).astype(jnp.float32)             # (Cout, 1)

    def full_spec(a):
        nd = a.ndim
        return pl.BlockSpec(a.shape, lambda n, _nd=nd: (0,) * _nd)

    out_flat = pl.pallas_call(
        unit_kernel,
        out_shape=jax.ShapeDtypeStruct((N, Cout, HW), jnp.float32),
        grid=(N,),
        in_specs=[
            pl.BlockSpec((1, H + 2, W + 2, Cin), lambda n: (n, 0, 0, 0)),
            full_spec(w1f), full_spec(b1f),
            full_spec(wf), full_spec(bff),
        ],
        out_specs=pl.BlockSpec((1, Cout, HW), lambda n: (n, 0, 0)),
        compiler_params=pltpu.CompilerParams(dimension_semantics=("parallel",)),
    )(x_pad, w1f, b1f, wf, bff)

    # (N, Cout, HW) -> (N, Cout, H, W): contiguous, free reshape (already NCHW).
    return out_flat.reshape(N, Cout, H, W)


def unit_reference(x_nchw, params):
    """Pure-JAX f32 reference (same math, via lax.conv) for correctness checking."""
    w1, b1, bn_s, bn_b, wc, bc, wo, bo = params
    x = jnp.transpose(x_nchw, (0, 2, 3, 1))
    x_pad = jnp.pad(x, ((0, 0), (1, 1), (1, 1), (0, 0)), mode='edge')
    h = lax.conv_general_dilated(
        x_pad, w1, window_strides=(1, 1), padding='VALID',
        dimension_numbers=('NHWC', 'HWIO', 'NHWC')) + b1
    h = h * bn_s + bn_b
    h = jnp.maximum(h, 0.0)
    h = jnp.einsum('nhwc,cd->nhwd', h, wc) + bc
    h = jnp.einsum('nhwc,cd->nhwd', h, wo) + bo
    h = jnp.maximum(h, 0.0)
    return jnp.transpose(h, (0, 3, 1, 2))


def make_params(key, Cin, C1, C2, Cout):
    ks = jax.random.split(key, 10)
    w1 = jax.random.normal(ks[0], (3, 3, Cin, C1), jnp.float32) * 0.1    # HWIO
    b1 = jax.random.normal(ks[1], (1, C1), jnp.float32) * 0.1
    # BatchNorm2d (eval mode): fold gamma/beta/running stats into scale & bias.
    gamma = 1.0 + 0.1 * jax.random.normal(ks[2], (1, C1), jnp.float32)
    beta = 0.1 * jax.random.normal(ks[3], (1, C1), jnp.float32)
    r_mean = 0.1 * jax.random.normal(ks[4], (1, C1), jnp.float32)
    r_var = 1.0 + jnp.abs(jax.random.normal(ks[5], (1, C1), jnp.float32)) * 0.1
    eps = 1e-5
    bn_s = gamma / jnp.sqrt(r_var + eps)
    bn_b = beta - r_mean * bn_s
    wc = jax.random.normal(ks[6], (C1, C2), jnp.float32) * 0.1           # core 1x1 conv
    bc = jax.random.normal(ks[7], (1, C2), jnp.float32) * 0.1
    wo = jax.random.normal(ks[8], (C2, Cout), jnp.float32) * 0.1         # out 1x1 conv
    bo = jax.random.normal(ks[9], (1, Cout), jnp.float32) * 0.1
    return (w1, b1, bn_s, bn_b, wc, bc, wo, bo)


if __name__ == "__main__":
    N, Cin, H, W = 2, 4, 16, 16          # x: NCHW, matching PyTorch conv convention
    C1, C2, Cout = 16, 16, 8             # core_in_channels, core_out_channels, out_channels

    key = jax.random.PRNGKey(0)
    kx, kp = jax.random.split(key)
    x = jax.random.normal(kx, (N, Cin, H, W), jnp.float32)
    params = make_params(kp, Cin, C1, C2, Cout)

    out = jax.jit(unit_forward)(x, params)
    out = jax.block_until_ready(out)

    ref = unit_reference(x, params)
    assert out.shape == (N, Cout, H, W), out.shape
    max_err = float(jnp.max(jnp.abs(out - ref)))
    # bf16 MXU operands with f32 accumulation -> loosen tolerance vs f32 reference.
    assert jnp.allclose(out, ref, rtol=2e-2, atol=2e-2), max_err

    print("KERNEL_OK")
</pallas_src>

<mosaic_0001>
module attributes {stable_mosaic.version = 11 : i64} {
  func.func @unit_kernel(%arg0: i32, %arg1: memref<1x18x18x4xbf16, #tpu.memory_space<vmem>>, %arg2: memref<16x36xbf16, #tpu.memory_space<vmem>>, %arg3: memref<16x1xf32, #tpu.memory_space<vmem>>, %arg4: memref<8x16xbf16, #tpu.memory_space<vmem>>, %arg5: memref<8x1xf32, #tpu.memory_space<vmem>>, %arg6: memref<1x8x256xf32, #tpu.memory_space<vmem>>) attributes {dimension_semantics = [#tpu.dimension_semantics<parallel>], iteration_bounds = array<i64: 2>, scalar_prefetch = 0 : i64, scratch_operands = 0 : i64, tpu.core_type = #tpu.core_type<tc>, window_params = [{transform_indices = @transform_0, window_bounds = array<i64: 1, 18, 18, 4>}, {pipeline_mode = #tpu.pipeline_mode<synchronous>, transform_indices = @transform_1, window_bounds = array<i64: 16, 36>}, {pipeline_mode = #tpu.pipeline_mode<synchronous>, transform_indices = @transform_2, window_bounds = array<i64: 16, 1>}, {pipeline_mode = #tpu.pipeline_mode<synchronous>, transform_indices = @transform_3, window_bounds = array<i64: 8, 16>}, {pipeline_mode = #tpu.pipeline_mode<synchronous>, transform_indices = @transform_4, window_bounds = array<i64: 8, 1>}, {transform_indices = @transform_5, window_bounds = array<i64: 1, 8, 256>}]} {
    %c0 = arith.constant 0 : index
    %c0_0 = arith.constant 0 : index
    %c0_1 = arith.constant 0 : index
    %c0_2 = arith.constant 0 : index
    %0 = vector.load %arg1[%c0, %c0_0, %c0_1, %c0_2] : memref<1x18x18x4xbf16, #tpu.memory_space<vmem>>, vector<1x18x18x4xbf16>
    %1 = vector.shape_cast %0 : vector<1x18x18x4xbf16> to vector<18x18x4xbf16>
    %2 = vector.extract_strided_slice %1 {offsets = [0, 0, 0], sizes = [16, 16, 4], strides = [1, 1, 1]} : vector<18x18x4xbf16> to vector<16x16x4xbf16>
    %3 = vector.extract_strided_slice %1 {offsets = [0, 1, 0], sizes = [16, 16, 4], strides = [1, 1, 1]} : vector<18x18x4xbf16> to vector<16x16x4xbf16>
    %4 = vector.extract_strided_slice %1 {offsets = [0, 2, 0], sizes = [16, 16, 4], strides = [1, 1, 1]} : vector<18x18x4xbf16> to vector<16x16x4xbf16>
    %5 = vector.extract_strided_slice %1 {offsets = [1, 0, 0], sizes = [16, 16, 4], strides = [1, 1, 1]} : vector<18x18x4xbf16> to vector<16x16x4xbf16>
    %6 = vector.extract_strided_slice %1 {offsets = [1, 1, 0], sizes = [16, 16, 4], strides = [1, 1, 1]} : vector<18x18x4xbf16> to vector<16x16x4xbf16>
    %7 = vector.extract_strided_slice %1 {offsets = [1, 2, 0], sizes = [16, 16, 4], strides = [1, 1, 1]} : vector<18x18x4xbf16> to vector<16x16x4xbf16>
    %8 = vector.extract_strided_slice %1 {offsets = [2, 0, 0], sizes = [16, 16, 4], strides = [1, 1, 1]} : vector<18x18x4xbf16> to vector<16x16x4xbf16>
    %9 = vector.extract_strided_slice %1 {offsets = [2, 1, 0], sizes = [16, 16, 4], strides = [1, 1, 1]} : vector<18x18x4xbf16> to vector<16x16x4xbf16>
    %10 = vector.extract_strided_slice %1 {offsets = [2, 2, 0], sizes = [16, 16, 4], strides = [1, 1, 1]} : vector<18x18x4xbf16> to vector<16x16x4xbf16>
    %11 = tpu.concatenate %2, %3, %4, %5, %6, %7, %8, %9, %10 in 2 : vector<16x16x4xbf16>, vector<16x16x4xbf16>, vector<16x16x4xbf16>, vector<16x16x4xbf16>, vector<16x16x4xbf16>, vector<16x16x4xbf16>, vector<16x16x4xbf16>, vector<16x16x4xbf16>, vector<16x16x4xbf16> -> vector<16x16x36xbf16>
    %12 = vector.shape_cast %11 : vector<16x16x36xbf16> to vector<256x36xbf16>
    %c0_3 = arith.constant 0 : index
    %c0_4 = arith.constant 0 : index
    %13 = vector.load %arg2[%c0_3, %c0_4] : memref<16x36xbf16, #tpu.memory_space<vmem>>, vector<16x36xbf16>
    %cst = arith.constant dense<0.000000e+00> : vector<16x256xf32>
    %14 = tpu.matmul %13, %12, %cst {dimension_numbers = #tpu.dot_dimension_numbers<[1], [1], [0], [0], [0, 0, 1, 0], [], []>} : vector<16x36xbf16>, vector<256x36xbf16>, vector<16x256xf32> -> vector<16x256xf32>
    %c0_5 = arith.constant 0 : index
    %c0_6 = arith.constant 0 : index
    %15 = vector.load %arg3[%c0_5, %c0_6] : memref<16x1xf32, #tpu.memory_space<vmem>>, vector<16x1xf32>
    %16 = vector.broadcast %15 : vector<16x1xf32> to vector<16x256xf32>
    %17 = arith.addf %14, %16 : vector<16x256xf32>
    %cst_7 = arith.constant 0.000000e+00 : f32
    %18 = vector.broadcast %cst_7 : f32 to vector<16x256xf32>
    %19 = arith.maximumf %17, %18 : vector<16x256xf32>
    %20 = arith.truncf %19 : vector<16x256xf32> to vector<16x256xbf16>
    %c0_8 = arith.constant 0 : index
    %c0_9 = arith.constant 0 : index
    %21 = vector.load %arg4[%c0_8, %c0_9] : memref<8x16xbf16, #tpu.memory_space<vmem>>, vector<8x16xbf16>
    %cst_10 = arith.constant dense<0.000000e+00> : vector<8x256xf32>
    %22 = tpu.matmul %21, %20, %cst_10 {dimension_numbers = #tpu.dot_dimension_numbers<[1], [0], [0], [1], [0, 0, 1, 1], [], []>} : vector<8x16xbf16>, vector<16x256xbf16>, vector<8x256xf32> -> vector<8x256xf32>
    %c0_11 = arith.constant 0 : index
    %c0_12 = arith.constant 0 : index
    %23 = vector.load %arg5[%c0_11, %c0_12] : memref<8x1xf32, #tpu.memory_space<vmem>>, vector<8x1xf32>
    %24 = vector.broadcast %23 : vector<8x1xf32> to vector<8x256xf32>
    %25 = arith.addf %22, %24 : vector<8x256xf32>
    %cst_13 = arith.constant 0.000000e+00 : f32
    %26 = vector.broadcast %cst_13 : f32 to vector<8x256xf32>
    %27 = arith.maximumf %25, %26 : vector<8x256xf32>
    %c0_14 = arith.constant 0 : index
    %c0_15 = arith.constant 0 : index
    %c0_16 = arith.constant 0 : index
    %28 = vector.load %arg6[%c0_14, %c0_15, %c0_16] : memref<1x8x256xf32, #tpu.memory_space<vmem>>, vector<1x8x256xf32>
    %29 = vector.shape_cast %28 : vector<1x8x256xf32> to vector<8x256xf32>
    %30 = vector.shape_cast %27 : vector<8x256xf32> to vector<1x8x256xf32>
    tpu.vector_store %arg6[%c0_14, %c0_15, %c0_16], %30 {strides = array<i32>} : memref<1x8x256xf32, #tpu.memory_space<vmem>>, vector<1x8x256xf32>,
    return
  }
  func.func @transform_0(%arg0: i32) -> (i32, i32, i32, i32) {
    %c0_i32 = arith.constant 0 : i32
    %c0_i32_0 = arith.constant 0 : i32
    %c0_i32_1 = arith.constant 0 : i32
    %c0_i32_2 = arith.constant 0 : i32
    return %arg0, %c0_i32, %c0_i32_0, %c0_i32_1 : i32, i32, i32, i32
  }
  func.func @transform_1(%arg0: i32) -> (i32, i32) {
    %c0_i32 = arith.constant 0 : i32
    %c0_i32_0 = arith.constant 0 : i32
    %c0_i32_1 = arith.constant 0 : i32
    return %c0_i32, %c0_i32_0 : i32, i32
  }
  func.func @transform_2(%arg0: i32) -> (i32, i32) {
    %c0_i32 = arith.constant 0 : i32
    %c0_i32_0 = arith.constant 0 : i32
    %c0_i32_1 = arith.constant 0 : i32
    return %c0_i32, %c0_i32_0 : i32, i32
  }
  func.func @transform_3(%arg0: i32) -> (i32, i32) {
    %c0_i32 = arith.constant 0 : i32
    %c0_i32_0 = arith.constant 0 : i32
    %c0_i32_1 = arith.constant 0 : i32
    return %c0_i32, %c0_i32_0 : i32, i32
  }
  func.func @transform_4(%arg0: i32) -> (i32, i32) {
    %c0_i32 = arith.constant 0 : i32
    %c0_i32_0 = arith.constant 0 : i32
    %c0_i32_1 = arith.constant 0 : i32
    return %c0_i32, %c0_i32_0 : i32, i32
  }
  func.func @transform_5(%arg0: i32) -> (i32, i32, i32) {
    %c0_i32 = arith.constant 0 : i32
    %c0_i32_0 = arith.constant 0 : i32
    %c0_i32_1 = arith.constant 0 : i32
    return %arg0, %c0_i32, %c0_i32_0 : i32, i32, i32
  }
}

</mosaic_0001>

<llo_original>
// kernel: unit_forward.1
$region0: #{unit_forward.1}
  #allocation0 [shape = 'u32[]', space=smem, size = 0x4, offset = 0x4, fixed_abs, tag = 'smem constant byte address 0x4 - core index']
  #allocation1 [shape = 'u32[144,128]{1,0:T(1,128)}', space=vmem, size = 0x12000, scoped, tag = 'internal scratch']
  %s0 = inlined_call_operand.vmem [shape: bf16[2,18,18,4], index: 0, kind: input, shape index: {}]
  %s1 = inlined_call_operand.vmem [shape: bf16[16,36], index: 1, kind: input, shape index: {}]
  %s2 = inlined_call_operand.vmem [shape: f32[16,1], index: 2, kind: input, shape index: {}]
  %s3 = inlined_call_operand.vmem [shape: bf16[8,16], index: 3, kind: input, shape index: {}]
  %s4 = inlined_call_operand.vmem [shape: f32[8,1], index: 4, kind: input, shape index: {}]
  %s5 = inlined_call_operand.vmem [shape: f32[2,8,256], index: 5, kind: output, shape index: {}]
  %s6 = sld [smem:[#allocation0]]
  $region53: #{unit_forward.1} parent=0
    _
  %s8 = ssub.s32 1, %s6
  %s9 = scalar_select 0, %s8, %s6
  loop: start=0, step=1, limit=4
  $region2: #{unit_forward.1} parent=0 // loop_pre_header
    _
  $region3: #{unit_forward.1} parent=0 // loop_header
    %s11 = sphi 0, %s15
    %p12 = scmp.ge.s32.totalorder %s11, 4
    %s21 = sphi 0, %s23
    %s24 = sphi 0, %s21
    %s25 = sphi 0, %s24
    %s41 = sphi 0, %s25
    %s45 = sphi 0, %s45
    %s47 = sphi 0, %s45
    %s48 = sphi 0, %s47
    %s62 = sphi 0, %s48
    %s66 = sphi 0, %s66
    %s68 = sphi 0, %s66
    %s69 = sphi 0, %s68
    %s83 = sphi 0, %s69
    %s87 = sphi 0, %s87
    %s89 = sphi 0, %s87
    %s90 = sphi 0, %s89
    %s104 = sphi 0, %s90
    %s108 = sphi 0, %s108
    %s110 = sphi 0, %s108
    %s111 = sphi 0, %s110
    %s125 = sphi 0, %s111
    %s131 = sphi 0, %s133
    %s134 = sphi 0, %s131
    %s135 = sphi 0, %s134
    %s151 = sphi 0, %s135
  $region4: #{unit_forward.1} parent=0 // loop_header_branch
    %14 = sbr.rel (%p12) target = $region8
  $region5: #{unit_forward.1} parent=0 // loop_body
    %s16 = ssub.s32 %s11, 1
    %s17 = ssub.s32 %s11, 2
    %s18 = sadd.s32 %s11, 1
    %s19 = ssub.s32 %s11, %s18
    %p20 = scmp.eq.s32.totalorder %s19, 0
    %s22 = sadd.s32 %s21, 1
    %s23 = scalar_select %p20, %s21, %s22
    %p26 = pneg %p20
    %p27 = scmp.eq.s32.totalorder %s11, 1
    %p28 = por %p26, %p27
    %p29 = scmp.ne.s32.totalorder %s21, %s24
    %p30 = scmp.eq.s32.totalorder %s11, 0
    %p31 = por %p29, %p30
    %p32 = scmp.ne.s32.totalorder %s21, %s24
    %p33 = scmp.eq.s32.totalorder %s16, 1
    %p34 = por %p32, %p33
    %p35 = scmp.ne.s32.totalorder %s24, %s25
    %p36 = scmp.eq.s32.totalorder %s16, 0
    %p37 = por %p35, %p36
    %p38 = scmp.ne.s32.totalorder %s24, %s25
    %p39 = scmp.eq.s32.totalorder %s17, 1
    %p40 = por %p38, %p39
    %p42 = scmp.ne.s32.totalorder %s25, %s41
    %p43 = scmp.eq.s32.totalorder %s17, 0
    %p44 = por %p42, %p43
    %s46 = sadd.s32 %s45, 1
    %p49 = scmp.eq.s32.totalorder %s11, 1
    %p50 = scmp.ne.s32.totalorder %s45, %s47
    %p51 = scmp.eq.s32.totalorder %s11, 0
    %p52 = por %p50, %p51
    %p53 = scmp.ne.s32.totalorder %s45, %s47
    %p54 = scmp.eq.s32.totalorder %s16, 1
    %p55 = por %p53, %p54
    %p56 = scmp.ne.s32.totalorder %s47, %s48
    %p57 = scmp.eq.s32.totalorder %s16, 0
    %p58 = por %p56, %p57
    %p59 = scmp.ne.s32.totalorder %s47, %s48
    %p60 = scmp.eq.s32.totalorder %s17, 1
    %p61 = por %p59, %p60
    %p63 = scmp.ne.s32.totalorder %s48, %s62
    %p64 = scmp.eq.s32.totalorder %s17, 0
    %p65 = por %p63, %p64
    %s67 = sadd.s32 %s66, 1
    %p70 = scmp.eq.s32.totalorder %s11, 1
    %p71 = scmp.ne.s32.totalorder %s66, %s68
    %p72 = scmp.eq.s32.totalorder %s11, 0
    %p73 = por %p71, %p72
    %p74 = scmp.ne.s32.totalorder %s66, %s68
    %p75 = scmp.eq.s32.totalorder %s16, 1
    %p76 = por %p74, %p75
    %p77 = scmp.ne.s32.totalorder %s68, %s69
    %p78 = scmp.eq.s32.totalorder %s16, 0
    %p79 = por %p77, %p78
    %p80 = scmp.ne.s32.totalorder %s68, %s69
    %p81 = scmp.eq.s32.totalorder %s17, 1
    %p82 = por %p80, %p81
    %p84 = scmp.ne.s32.totalorder %s69, %s83
    %p85 = scmp.eq.s32.totalorder %s17, 0
    %p86 = por %p84, %p85
    %s88 = sadd.s32 %s87, 1
    %p91 = scmp.eq.s32.totalorder %s11, 1
    %p92 = scmp.ne.s32.totalorder %s87, %s89
    %p93 = scmp.eq.s32.totalorder %s11, 0
    %p94 = por %p92, %p93
    %p95 = scmp.ne.s32.totalorder %s87, %s89
    %p96 = scmp.eq.s32.totalorder %s16, 1
    %p97 = por %p95, %p96
    %p98 = scmp.ne.s32.totalorder %s89, %s90
    %p99 = scmp.eq.s32.totalorder %s16, 0
    %p100 = por %p98, %p99
    %p101 = scmp.ne.s32.totalorder %s89, %s90
    %p102 = scmp.eq.s32.totalorder %s17, 1
    %p103 = por %p101, %p102
    %p105 = scmp.ne.s32.totalorder %s90, %s104
    %p106 = scmp.eq.s32.totalorder %s17, 0
    %p107 = por %p105, %p106
    %s109 = sadd.s32 %s108, 1
    %p112 = scmp.eq.s32.totalorder %s11, 1
    %p113 = scmp.ne.s32.totalorder %s108, %s110
    %p114 = scmp.eq.s32.totalorder %s11, 0
    %p115 = por %p113, %p114
    %p116 = scmp.ne.s32.totalorder %s108, %s110
    %p117 = scmp.eq.s32.totalorder %s16, 1
    %p118 = por %p116, %p117
    %p119 = scmp.ne.s32.totalorder %s110, %s111
    %p120 = scmp.eq.s32.totalorder %s16, 0
    %p121 = por %p119, %p120
    %p122 = scmp.ne.s32.totalorder %s110, %s111
    %p123 = scmp.eq.s32.totalorder %s17, 1
    %p124 = por %p122, %p123
    %p126 = scmp.ne.s32.totalorder %s111, %s125
    %p127 = scmp.eq.s32.totalorder %s17, 0
    %p128 = por %p126, %p127
    %s129 = ssub.s32 %s11, %s18
    %p130 = scmp.eq.s32.totalorder %s129, 0
    %s132 = sadd.s32 %s131, 1
    %s133 = scalar_select %p130, %s131, %s132
    %p136 = pneg %p130
    %p137 = scmp.eq.s32.totalorder %s11, 1
    %p138 = por %p136, %p137
    %p139 = scmp.ne.s32.totalorder %s131, %s134
    %p140 = scmp.eq.s32.totalorder %s11, 0
    %p141 = por %p139, %p140
    %p142 = scmp.ne.s32.totalorder %s131, %s134
    %p143 = scmp.eq.s32.totalorder %s16, 1
    %p144 = por %p142, %p143
    %p145 = scmp.ne.s32.totalorder %s134, %s135
    %p146 = scmp.eq.s32.totalorder %s16, 0
    %p147 = por %p145, %p146
    %p148 = scmp.ne.s32.totalorder %s134, %s135
    %p149 = scmp.eq.s32.totalorder %s17, 1
    %p150 = por %p148, %p149
    %p152 = scmp.ne.s32.totalorder %s135, %s151
    %p153 = scmp.eq.s32.totalorder %s17, 0
    %p154 = por %p152, %p153
    %p155 = scmp.le.s32.totalorder 1, %s11
    %p156 = scmp.lt.s32.totalorder %s11, 3
    %p157 = pnand %p155, %p156
    %p158 = pneg %p157
    // Predicated region
    $region9: #{unit_forward.1} parent=5 // pred_check
      _
    $region10: #{unit_forward.1} parent=5 // pred_check_branch
      %160 = sbr.rel (%p157) target = $region12
    $region11: #{unit_forward.1} parent=5 // pred_region
      %s161 = ssub.s32 %s11, 1
      // Predicated region
      $region13: #{unit_forward.1} parent=11 // pred_check
        %p162 = pneg %p58
      $region14: #{unit_forward.1} parent=11 // pred_check_branch
        %164 = sbr.rel (%p162) target = $region16
      $region15: #{unit_forward.1} parent=11 // pred_region
        _
      $region16: #{unit_forward.1} parent=11 // pred_fallthru
        _
      // Predicated region
      $region17: #{unit_forward.1} parent=11 // pred_check
        %p165 = pneg %p79
      $region18: #{unit_forward.1} parent=11 // pred_check_branch
        %167 = sbr.rel (%p165) target = $region20
      $region19: #{unit_forward.1} parent=11 // pred_region
        _
      $region20: #{unit_forward.1} parent=11 // pred_fallthru
        _
      // Predicated region
      $region21: #{unit_forward.1} parent=11 // pred_check
        %p168 = pneg %p100
      $region22: #{unit_forward.1} parent=11 // pred_check_branch
        %170 = sbr.rel (%p168) target = $region24
      $region23: #{unit_forward.1} parent=11 // pred_region
        _
      $region24: #{unit_forward.1} parent=11 // pred_fallthru
        _
      // Predicated region
      $region25: #{unit_forward.1} parent=11 // pred_check
        %p171 = pneg %p121
      $region26: #{unit_forward.1} parent=11 // pred_check_branch
        %173 = sbr.rel (%p171) target = $region28
      $region27: #{unit_forward.1} parent=11 // pred_region
        _
      $region28: #{unit_forward.1} parent=11 // pred_fallthru
        _
    $region12: #{unit_forward.1} parent=5 // pred_fallthru
      _
    %p174 = scmp.lt.s32.totalorder %s11, 2
    // Predicated region
    $region29: #{unit_forward.1} parent=5 // pred_check
      %p175 = pneg %p174
    $region30: #{unit_forward.1} parent=5 // pred_check_branch
      %177 = sbr.rel (%p175) target = $region32
    $region31: #{unit_forward.1} parent=5 // pred_region
      // Predicated region
      $region33: #{unit_forward.1} parent=31 // pred_check
        %p178 = pneg %p31
      $region34: #{unit_forward.1} parent=31 // pred_check_branch
        %180 = sbr.rel (%p178) target = $region36
      $region35: #{unit_forward.1} parent=31 // pred_region
        %p181 = scmp.lt.s32.totalorder %s11, 1
        %s182 = scalar_select %p181, %s11, 1
        %s183 = smul.addr %s182, 54
        %s184 = smul.addr %s183, 4
        %s185 = scalar_lea.vmem %s0, %s184
      $region36: #{unit_forward.1} parent=31 // pred_fallthru
        _
    $region32: #{unit_forward.1} parent=5 // pred_fallthru
      _
    %p186 = scmp.le.s32.totalorder 1, %s11
    %p187 = scmp.lt.s32.totalorder %s11, 3
    %p188 = pnand %p186, %p187
    %p189 = pneg %p188
    // Predicated region
    $region37: #{unit_forward.1} parent=5 // pred_check
      _
    $region38: #{unit_forward.1} parent=5 // pred_check_branch
      %191 = sbr.rel (%p188) target = $region40
    $region39: #{unit_forward.1} parent=5 // pred_region
      %s192 = ssub.s32 %s11, 1
      %p193 = scmp.lt.s32.totalorder %s16, 1
      %s194 = scalar_select %p193, %s16, 1
      %s195 = smul.addr %s194, 54
      %s196 = smul.addr %s195, 4
      %s197 = scalar_lea.vmem %s0, %s196
      %p198 = pneg %p37
      %p199 = pneg %p34
      %p200 = pneg %p58
      %p201 = pneg %p55
      %p202 = pneg %p79
      %p203 = pneg %p76
      %p204 = pneg %p100
      %p205 = pneg %p97
      %p206 = pneg %p121
      %p207 = pneg %p118
      %p208 = pneg %p147
      %p209 = pneg %p144
      %p210 = scmp.lt.s32.totalorder %s16, 1
      %s211 = scalar_select %p210, %s16, 1
      %s212 = smul.addr %s211, 2
      %s213 = smul.addr %s212, 8
      %s214 = scalar_lea.vmem %s5, %s213
      %p215 = scmp.lt.s32.totalorder %s16, 1
      %s216 = scalar_select %p215, %s16, 1
      %s217 = smul.addr %s216, 54
      %s218 = smul.addr %s217, 4
      %s219 = scalar_lea.vmem %s0, %s218
      %p220 = scmp.lt.s32.totalorder %s16, 1
      %s221 = scalar_select %p220, %s16, 1
      %s222 = smul.addr %s221, 2
      %s223 = smul.addr %s222, 8
      %s224 = scalar_lea.vmem %s5, %s223
      %v226 = vld [vmem:[%s219] sm:$0xf]
      %v227 = vld [vmem:[%s219 + $0x4] sm:$0xf]
      %v228 = vld [vmem:[%s219 + $0x8] sm:$0x1]
      %v229 = vld [vmem:[%s219 + $0xc] sm:$0xf]
      %v230 = vld [vmem:[%s219 + $0x10] sm:$0xf]
      %v231 = vld [vmem:[%s219 + $0x14] sm:$0x1]
      %v232 = vld [vmem:[%s219 + $0x18] sm:$0xf]
      %v233 = vld [vmem:[%s219 + $0x1c] sm:$0xf]
      %v234 = vld [vmem:[%s219 + $0x20] sm:$0x1]
      %v235 = vld [vmem:[%s219 + $0x24] sm:$0xf]
      %v236 = vld [vmem:[%s219 + $0x28] sm:$0xf]
      %v237 = vld [vmem:[%s219 + $0x2c] sm:$0x1]
      %v238 = vld [vmem:[%s219 + $0x30] sm:$0xf]
      %v239 = vld [vmem:[%s219 + $0x34] sm:$0xf]
      %v240 = vld [vmem:[%s219 + $0x38] sm:$0x1]
      %v241 = vld [vmem:[%s219 + $0x3c] sm:$0xf]
      %v242 = vld [vmem:[%s219 + $0x40] sm:$0xf]
      %v243 = vld [vmem:[%s219 + $0x44] sm:$0x1]
      %v244 = vld [vmem:[%s219 + $0x48] sm:$0xf]
      %v245 = vld [vmem:[%s219 + $0x4c] sm:$0xf]
      %v246 = vld [vmem:[%s219 + $0x50] sm:$0x1]
      %v247 = vld [vmem:[%s219 + $0x54] sm:$0xf]
      %v248 = vld [vmem:[%s219 + $0x58] sm:$0xf]
      %v249 = vld [vmem:[%s219 + $0x5c] sm:$0x1]
      %v250 = vld [vmem:[%s219 + $0x60] sm:$0xf]
      %v251 = vld [vmem:[%s219 + $0x64] sm:$0xf]
      %v252 = vld [vmem:[%s219 + $0x68] sm:$0x1]
      %v253 = vld [vmem:[%s219 + $0x6c] sm:$0xf]
      %v254 = vld [vmem:[%s219 + $0x70] sm:$0xf]
      %v255 = vld [vmem:[%s219 + $0x74] sm:$0x1]
      %v256 = vld [vmem:[%s219 + $0x78] sm:$0xf]
      %v257 = vld [vmem:[%s219 + $0x7c] sm:$0xf]
      %v258 = vld [vmem:[%s219 + $0x80] sm:$0x1]
      %v259 = vld [vmem:[%s219 + $0x84] sm:$0xf]
      %v260 = vld [vmem:[%s219 + $0x88] sm:$0xf]
      %v261 = vld [vmem:[%s219 + $0x8c] sm:$0x1]
      %v262 = vld [vmem:[%s219 + $0x90] sm:$0xf]
      %v263 = vld [vmem:[%s219 + $0x94] sm:$0xf]
      %v264 = vld [vmem:[%s219 + $0x98] sm:$0x1]
      %v265 = vld [vmem:[%s219 + $0x9c] sm:$0xf]
      %v266 = vld [vmem:[%s219 + $0xa0] sm:$0xf]
      %v267 = vld [vmem:[%s219 + $0xa4] sm:$0x1]
      %v268 = vld [vmem:[%s219 + $0xa8] sm:$0xf]
      %v269 = vld [vmem:[%s219 + $0xac] sm:$0xf]
      %v270 = vld [vmem:[%s219 + $0xb0] sm:$0x1]
      %v271 = vld [vmem:[%s219 + $0xb4] sm:$0xf]
      %v272 = vld [vmem:[%s219 + $0xb8] sm:$0xf]
      %v273 = vld [vmem:[%s219 + $0xbc] sm:$0x1]
      %v274 = vld [vmem:[%s219 + $0xc0] sm:$0xf]
      %v275 = vld [vmem:[%s219 + $0xc4] sm:$0xf]
      %v276 = vld [vmem:[%s219 + $0xc8] sm:$0x1]
      %v277 = vld [vmem:[%s219 + $0xcc] sm:$0xf]
      %v278 = vld [vmem:[%s219 + $0xd0] sm:$0xf]
      %v279 = vld [vmem:[%s219 + $0xd4] sm:$0x1]
      %v312 = vunpack.c.l.b16 %v226
      %v313 = vunpack.c.l.b16 %v227
      %v314 = vunpack.c.l.b16 %v229
      %v315 = vunpack.c.l.b16 %v230
      %v316 = vunpack.c.l.b16 %v232
      %v317 = vunpack.c.l.b16 %v233
      %v318 = vunpack.c.l.b16 %v235
      %v319 = vunpack.c.l.b16 %v236
      %v320 = vunpack.c.l.b16 %v238
      %v321 = vunpack.c.l.b16 %v239
      %v322 = vunpack.c.l.b16 %v241
      %v323 = vunpack.c.l.b16 %v242
      %v324 = vunpack.c.l.b16 %v244
      %v325 = vunpack.c.l.b16 %v245
      %v326 = vunpack.c.l.b16 %v247
      %v327 = vunpack.c.l.b16 %v248
      %v328 = vunpack.c.l.b16 %v250
      %v329 = vunpack.c.l.b16 %v251
      %v330 = vunpack.c.l.b16 %v253
      %v331 = vunpack.c.l.b16 %v254
      %v332 = vunpack.c.l.b16 %v256
      %v333 = vunpack.c.l.b16 %v257
      %v334 = vunpack.c.l.b16 %v259
      %v335 = vunpack.c.l.b16 %v260
      %v336 = vunpack.c.l.b16 %v262
      %v337 = vunpack.c.l.b16 %v263
      %v338 = vunpack.c.l.b16 %v265
      %v339 = vunpack.c.l.b16 %v266
      %v340 = vunpack.c.l.b16 %v268
      %v341 = vunpack.c.l.b16 %v269
      %v342 = vunpack.c.l.b16 %v271
      %v343 = vunpack.c.l.b16 %v272
      %v344 = vpack.c.b16 %v313, %v312
      %v345 = vpack.c.b16 %v315, %v314
      %v346 = vpack.c.b16 %v317, %v316
      %v347 = vpack.c.b16 %v319, %v318
      %v348 = vpack.c.b16 %v321, %v320
      %v349 = vpack.c.b16 %v323, %v322
      %v350 = vpack.c.b16 %v325, %v324
      %v351 = vpack.c.b16 %v327, %v326
      %v352 = vpack.c.b16 %v329, %v328
      %v353 = vpack.c.b16 %v331, %v330
      %v354 = vpack.c.b16 %v333, %v332
      %v355 = vpack.c.b16 %v335, %v334
      %v356 = vpack.c.b16 %v337, %v336
      %v357 = vpack.c.b16 %v339, %v338
      %v358 = vpack.c.b16 %v341, %v340
      %v359 = vpack.c.b16 %v343, %v342
      %v376 = vunpack.c.l.b16 %v228
      %v377 = vunpack.c.l.b16 %v231
      %v378 = vunpack.c.l.b16 %v234
      %v379 = vunpack.c.l.b16 %v237
      %v380 = vunpack.c.l.b16 %v240
      %v381 = vunpack.c.l.b16 %v243
      %v382 = vunpack.c.l.b16 %v246
      %v383 = vunpack.c.l.b16 %v249
      %v384 = vunpack.c.l.b16 %v252
      %v385 = vunpack.c.l.b16 %v255
      %v386 = vunpack.c.l.b16 %v258
      %v387 = vunpack.c.l.b16 %v261
      %v388 = vunpack.c.l.b16 %v264
      %v389 = vunpack.c.l.b16 %v267
      %v390 = vunpack.c.l.b16 %v270
      %v391 = vunpack.c.l.b16 %v273
      %v392 = vpack.c.b16 %v376, %v376
      %v393 = vpack.c.b16 %v377, %v377
      %v394 = vpack.c.b16 %v378, %v378
      %v395 = vpack.c.b16 %v379, %v379
      %v396 = vpack.c.b16 %v380, %v380
      %v397 = vpack.c.b16 %v381, %v381
      %v398 = vpack.c.b16 %v382, %v382
      %v399 = vpack.c.b16 %v383, %v383
      %v400 = vpack.c.b16 %v384, %v384
      %v401 = vpack.c.b16 %v385, %v385
      %v402 = vpack.c.b16 %v386, %v386
      %v403 = vpack.c.b16 %v387, %v387
      %v404 = vpack.c.b16 %v388, %v388
      %v405 = vpack.c.b16 %v389, %v389
      %v406 = vpack.c.b16 %v390, %v390
      %v407 = vpack.c.b16 %v391, %v391
      %vm408 = vsmask.f32 7424
      %v410 = vshrl.u32 %v344, 16
      %v412 = vshll.u32 %v344, 16
      %v414 = vrot.slane %v412, 1
      %v415 = vor.u32 %v410, %v414
      %v417 = vshll.u32 %v392, 16
      %v419 = vrot.slane %v417, 1
      %v420 = vsel %vm408, %v415, %v419
      %v422 = vshrl.u32 %v345, 16
      %v424 = vshll.u32 %v345, 16
      %v426 = vrot.slane %v424, 1
      %v427 = vor.u32 %v422, %v426
      %v429 = vshll.u32 %v393, 16
      %v431 = vrot.slane %v429, 1
      %v432 = vsel %vm408, %v427, %v431
      %v434 = vshrl.u32 %v346, 16
      %v436 = vshll.u32 %v346, 16
      %v438 = vrot.slane %v436, 1
      %v439 = vor.u32 %v434, %v438
      %v441 = vshll.u32 %v394, 16
      %v443 = vrot.slane %v441, 1
      %v444 = vsel %vm408, %v439, %v443
      %v446 = vshrl.u32 %v347, 16
      %v448 = vshll.u32 %v347, 16
      %v450 = vrot.slane %v448, 1
      %v451 = vor.u32 %v446, %v450
      %v453 = vshll.u32 %v395, 16
      %v455 = vrot.slane %v453, 1
      %v456 = vsel %vm408, %v451, %v455
      %v458 = vshrl.u32 %v348, 16
      %v460 = vshll.u32 %v348, 16
      %v462 = vrot.slane %v460, 1
      %v463 = vor.u32 %v458, %v462
      %v465 = vshll.u32 %v396, 16
      %v467 = vrot.slane %v465, 1
      %v468 = vsel %vm408, %v463, %v467
      %v470 = vshrl.u32 %v349, 16
      %v472 = vshll.u32 %v349, 16
      %v474 = vrot.slane %v472, 1
      %v475 = vor.u32 %v470, %v474
      %v477 = vshll.u32 %v397, 16
      %v479 = vrot.slane %v477, 1
      %v480 = vsel %vm408, %v475, %v479
      %v482 = vshrl.u32 %v350, 16
      %v484 = vshll.u32 %v350, 16
      %v486 = vrot.slane %v484, 1
      %v487 = vor.u32 %v482, %v486
      %v489 = vshll.u32 %v398, 16
      %v491 = vrot.slane %v489, 1
      %v492 = vsel %vm408, %v487, %v491
      %v494 = vshrl.u32 %v351, 16
      %v496 = vshll.u32 %v351, 16
      %v498 = vrot.slane %v496, 1
      %v499 = vor.u32 %v494, %v498
      %v501 = vshll.u32 %v399, 16
      %v503 = vrot.slane %v501, 1
      %v504 = vsel %vm408, %v499, %v503
      %v506 = vshrl.u32 %v352, 16
      %v508 = vshll.u32 %v352, 16
      %v510 = vrot.slane %v508, 1
      %v511 = vor.u32 %v506, %v510
      %v513 = vshll.u32 %v400, 16
      %v515 = vrot.slane %v513, 1
      %v516 = vsel %vm408, %v511, %v515
      %v518 = vshrl.u32 %v353, 16
      %v520 = vshll.u32 %v353, 16
      %v522 = vrot.slane %v520, 1
      %v523 = vor.u32 %v518, %v522
      %v525 = vshll.u32 %v401, 16
      %v527 = vrot.slane %v525, 1
      %v528 = vsel %vm408, %v523, %v527
      %v530 = vshrl.u32 %v354, 16
      %v532 = vshll.u32 %v354, 16
      %v534 = vrot.slane %v532, 1
      %v535 = vor.u32 %v530, %v534
      %v537 = vshll.u32 %v402, 16
      %v539 = vrot.slane %v537, 1
      %v540 = vsel %vm408, %v535, %v539
      %v542 = vshrl.u32 %v355, 16
      %v544 = vshll.u32 %v355, 16
      %v546 = vrot.slane %v544, 1
      %v547 = vor.u32 %v542, %v546
      %v549 = vshll.u32 %v403, 16
      %v551 = vrot.slane %v549, 1
      %v552 = vsel %vm408, %v547, %v551
      %v554 = vshrl.u32 %v356, 16
      %v556 = vshll.u32 %v356, 16
      %v558 = vrot.slane %v556, 1
      %v559 = vor.u32 %v554, %v558
      %v561 = vshll.u32 %v404, 16
      %v563 = vrot.slane %v561, 1
      %v564 = vsel %vm408, %v559, %v563
      %v566 = vshrl.u32 %v357, 16
      %v568 = vshll.u32 %v357, 16
      %v570 = vrot.slane %v568, 1
      %v571 = vor.u32 %v566, %v570
      %v573 = vshll.u32 %v405, 16
      %v575 = vrot.slane %v573, 1
      %v576 = vsel %vm408, %v571, %v575
      %v578 = vshrl.u32 %v358, 16
      %v580 = vshll.u32 %v358, 16
      %v582 = vrot.slane %v580, 1
      %v583 = vor.u32 %v578, %v582
      %v585 = vshll.u32 %v406, 16
      %v587 = vrot.slane %v585, 1
      %v588 = vsel %vm408, %v583, %v587
      %v590 = vshrl.u32 %v359, 16
      %v592 = vshll.u32 %v359, 16
      %v594 = vrot.slane %v592, 1
      %v595 = vor.u32 %v590, %v594
      %v597 = vshll.u32 %v407, 16
      %v599 = vrot.slane %v597, 1
      %v600 = vsel %vm408, %v595, %v599
      %601 = vrot.lane.b32.xlu0 %v420, 4
      %v602 = vpop.permute.xlu0 %601
      %603 = vrot.lane.b32.xlu0 %v432, 4
      %v604 = vpop.permute.xlu0 %603
      %605 = vrot.lane.b32.xlu0 %v444, 4
      %v606 = vpop.permute.xlu0 %605
      %607 = vrot.lane.b32.xlu0 %v456, 4
      %v608 = vpop.permute.xlu0 %607
      %609 = vrot.lane.b32.xlu0 %v468, 4
      %v610 = vpop.permute.xlu0 %609
      %611 = vrot.lane.b32.xlu0 %v480, 4
      %v612 = vpop.permute.xlu0 %611
      %613 = vrot.lane.b32.xlu0 %v492, 4
      %v614 = vpop.permute.xlu0 %613
      %615 = vrot.lane.b32.xlu0 %v504, 4
      %v616 = vpop.permute.xlu0 %615
      %617 = vrot.lane.b32.xlu0 %v516, 4
      %v618 = vpop.permute.xlu0 %617
      %619 = vrot.lane.b32.xlu0 %v528, 4
      %v620 = vpop.permute.xlu0 %619
      %621 = vrot.lane.b32.xlu0 %v540, 4
      %v622 = vpop.permute.xlu0 %621
      %623 = vrot.lane.b32.xlu0 %v552, 4
      %v624 = vpop.permute.xlu0 %623
      %625 = vrot.lane.b32.xlu0 %v564, 4
      %v626 = vpop.permute.xlu0 %625
      %627 = vrot.lane.b32.xlu0 %v576, 4
      %v628 = vpop.permute.xlu0 %627
      %629 = vrot.lane.b32.xlu0 %v588, 4
      %v630 = vpop.permute.xlu0 %629
      %631 = vrot.lane.b32.xlu0 %v600, 4
      %v632 = vpop.permute.xlu0 %631
      %vm633 = vcmask 1046528
      %v634 = vrot.slane %v344, 1
      %v635 = vrot.slane %v392, 1
      %v636 = vsel %vm633, %v634, %v635
      %v637 = vrot.slane %v345, 1
      %v638 = vrot.slane %v393, 1
      %v639 = vsel %vm633, %v637, %v638
      %v640 = vrot.slane %v346, 1
      %v641 = vrot.slane %v394, 1
      %v642 = vsel %vm633, %v640, %v641
      %v643 = vrot.slane %v347, 1
      %v644 = vrot.slane %v395, 1
      %v645 = vsel %vm633, %v643, %v644
      %v646 = vrot.slane %v348, 1
      %v647 = vrot.slane %v396, 1
      %v648 = vsel %vm633, %v646, %v647
      %v649 = vrot.slane %v349, 1
      %v650 = vrot.slane %v397, 1
      %v651 = vsel %vm633, %v649, %v650
      %v652 = vrot.slane %v350, 1
      %v653 = vrot.slane %v398, 1
      %v654 = vsel %vm633, %v652, %v653
      %v655 = vrot.slane %v351, 1
      %v656 = vrot.slane %v399, 1
      %v657 = vsel %vm633, %v655, %v656
      %v658 = vrot.slane %v352, 1
      %v659 = vrot.slane %v400, 1
      %v660 = vsel %vm633, %v658, %v659
      %v661 = vrot.slane %v353, 1
      %v662 = vrot.slane %v401, 1
      %v663 = vsel %vm633, %v661, %v662
      %v664 = vrot.slane %v354, 1
      %v665 = vrot.slane %v402, 1
      %v666 = vsel %vm633, %v664, %v665
      %v667 = vrot.slane %v355, 1
      %v668 = vrot.slane %v403, 1
      %v669 = vsel %vm633, %v667, %v668
      %v670 = vrot.slane %v356, 1
      %v671 = vrot.slane %v404, 1
      %v672 = vsel %vm633, %v670, %v671
      %v673 = vrot.slane %v357, 1
      %v674 = vrot.slane %v405, 1
      %v675 = vsel %vm633, %v673, %v674
      %v676 = vrot.slane %v358, 1
      %v677 = vrot.slane %v406, 1
      %v678 = vsel %vm633, %v676, %v677
      %v679 = vrot.slane %v359, 1
      %v680 = vrot.slane %v407, 1
      %v681 = vsel %vm633, %v679, %v680
      %682 = vrot.lane.b32.xlu0 %v636, 8
      %v683 = vpop.permute.xlu0 %682
      %684 = vrot.lane.b32.xlu0 %v639, 8
      %v685 = vpop.permute.xlu0 %684
      %686 = vrot.lane.b32.xlu0 %v642, 8
      %v687 = vpop.permute.xlu0 %686
      %688 = vrot.lane.b32.xlu0 %v645, 8
      %v689 = vpop.permute.xlu0 %688
      %690 = vrot.lane.b32.xlu0 %v648, 8
      %v691 = vpop.permute.xlu0 %690
      %692 = vrot.lane.b32.xlu0 %v651, 8
      %v693 = vpop.permute.xlu0 %692
      %694 = vrot.lane.b32.xlu0 %v654, 8
      %v695 = vpop.permute.xlu0 %694
      %696 = vrot.lane.b32.xlu0 %v657, 8
      %v697 = vpop.permute.xlu0 %696
      %698 = vrot.lane.b32.xlu0 %v660, 8
      %v699 = vpop.permute.xlu0 %698
      %700 = vrot.lane.b32.xlu0 %v663, 8
      %v701 = vpop.permute.xlu0 %700
      %702 = vrot.lane.b32.xlu0 %v666, 8
      %v703 = vpop.permute.xlu0 %702
      %704 = vrot.lane.b32.xlu0 %v669, 8
      %v705 = vpop.permute.xlu0 %704
      %706 = vrot.lane.b32.xlu0 %v672, 8
      %v707 = vpop.permute.xlu0 %706
      %708 = vrot.lane.b32.xlu0 %v675, 8
      %v709 = vpop.permute.xlu0 %708
      %710 = vrot.lane.b32.xlu0 %v678, 8
      %v711 = vpop.permute.xlu0 %710
      %712 = vrot.lane.b32.xlu0 %v681, 8
      %v713 = vpop.permute.xlu0 %712
      %v716 = vunpack.c.l.b16 %v274
      %v717 = vunpack.c.l.b16 %v275
      %v718 = vpack.c.b16 %v717, %v716
      %719 = vrot.lane.b32.xlu0 %v345, 12
      %v720 = vpop.permute.xlu0 %719
      %721 = vrot.lane.b32.xlu0 %v346, 12
      %v722 = vpop.permute.xlu0 %721
      %723 = vrot.lane.b32.xlu0 %v347, 12
      %v724 = vpop.permute.xlu0 %723
      %725 = vrot.lane.b32.xlu0 %v348, 12
      %v726 = vpop.permute.xlu0 %725
      %727 = vrot.lane.b32.xlu0 %v349, 12
      %v728 = vpop.permute.xlu0 %727
      %729 = vrot.lane.b32.xlu0 %v350, 12
      %v730 = vpop.permute.xlu0 %729
      %731 = vrot.lane.b32.xlu0 %v351, 12
      %v732 = vpop.permute.xlu0 %731
      %733 = vrot.lane.b32.xlu0 %v352, 12
      %v734 = vpop.permute.xlu0 %733
      %735 = vrot.lane.b32.xlu0 %v353, 12
      %v736 = vpop.permute.xlu0 %735
      %737 = vrot.lane.b32.xlu0 %v354, 12
      %v738 = vpop.permute.xlu0 %737
      %739 = vrot.lane.b32.xlu0 %v355, 12
      %v740 = vpop.permute.xlu0 %739
      %741 = vrot.lane.b32.xlu0 %v356, 12
      %v742 = vpop.permute.xlu0 %741
      %743 = vrot.lane.b32.xlu0 %v357, 12
      %v744 = vpop.permute.xlu0 %743
      %745 = vrot.lane.b32.xlu0 %v358, 12
      %v746 = vpop.permute.xlu0 %745
      %747 = vrot.lane.b32.xlu0 %v359, 12
      %v748 = vpop.permute.xlu0 %747
      %749 = vrot.lane.b32.xlu0 %v718, 12
      %v750 = vpop.permute.xlu0 %749
      %v752 = vunpack.c.l.b16 %v276
      %v753 = vpack.c.b16 %v752, %v752
      %v755 = vshrl.u32 %v718, 16
      %v757 = vshll.u32 %v718, 16
      %v759 = vrot.slane %v757, 1
      %v760 = vor.u32 %v755, %v759
      %v762 = vshll.u32 %v753, 16
      %v764 = vrot.slane %v762, 1
      %v765 = vsel %vm408, %v760, %v764
      %766 = vrot.lane.b32.xlu0 %v432, 16
      %v767 = vpop.permute.xlu0 %766
      %768 = vrot.lane.b32.xlu0 %v444, 16
      %v769 = vpop.permute.xlu0 %768
      %770 = vrot.lane.b32.xlu0 %v456, 16
      %v771 = vpop.permute.xlu0 %770
      %772 = vrot.lane.b32.xlu0 %v468, 16
      %v773 = vpop.permute.xlu0 %772
      %774 = vrot.lane.b32.xlu0 %v480, 16
      %v775 = vpop.permute.xlu0 %774
      %776 = vrot.lane.b32.xlu0 %v492, 16
      %v777 = vpop.permute.xlu0 %776
      %778 = vrot.lane.b32.xlu0 %v504, 16
      %v779 = vpop.permute.xlu0 %778
      %780 = vrot.lane.b32.xlu0 %v516, 16
      %v781 = vpop.permute.xlu0 %780
      %782 = vrot.lane.b32.xlu0 %v528, 16
      %v783 = vpop.permute.xlu0 %782
      %784 = vrot.lane.b32.xlu0 %v540, 16
      %v785 = vpop.permute.xlu0 %784
      %786 = vrot.lane.b32.xlu0 %v552, 16
      %v787 = vpop.permute.xlu0 %786
      %788 = vrot.lane.b32.xlu0 %v564, 16
      %v789 = vpop.permute.xlu0 %788
      %790 = vrot.lane.b32.xlu0 %v576, 16
      %v791 = vpop.permute.xlu0 %790
      %792 = vrot.lane.b32.xlu0 %v588, 16
      %v793 = vpop.permute.xlu0 %792
      %794 = vrot.lane.b32.xlu0 %v600, 16
      %v795 = vpop.permute.xlu0 %794
      %796 = vrot.lane.b32.xlu0 %v765, 16
      %v797 = vpop.permute.xlu0 %796
      %v798 = vrot.slane %v718, 1
      %v799 = vrot.slane %v753, 1
      %v800 = vsel %vm633, %v798, %v799
      %801 = vrot.lane.b32.xlu0 %v639, 20
      %v802 = vpop.permute.xlu0 %801
      %803 = vrot.lane.b32.xlu0 %v642, 20
      %v804 = vpop.permute.xlu0 %803
      %805 = vrot.lane.b32.xlu0 %v645, 20
      %v806 = vpop.permute.xlu0 %805
      %807 = vrot.lane.b32.xlu0 %v648, 20
      %v808 = vpop.permute.xlu0 %807
      %809 = vrot.lane.b32.xlu0 %v651, 20
      %v810 = vpop.permute.xlu0 %809
      %811 = vrot.lane.b32.xlu0 %v654, 20
      %v812 = vpop.permute.xlu0 %811
      %813 = vrot.lane.b32.xlu0 %v657, 20
      %v814 = vpop.permute.xlu0 %813
      %815 = vrot.lane.b32.xlu0 %v660, 20
      %v816 = vpop.permute.xlu0 %815
      %817 = vrot.lane.b32.xlu0 %v663, 20
      %v818 = vpop.permute.xlu0 %817
      %819 = vrot.lane.b32.xlu0 %v666, 20
      %v820 = vpop.permute.xlu0 %819
      %821 = vrot.lane.b32.xlu0 %v669, 20
      %v822 = vpop.permute.xlu0 %821
      %823 = vrot.lane.b32.xlu0 %v672, 20
      %v824 = vpop.permute.xlu0 %823
      %825 = vrot.lane.b32.xlu0 %v675, 20
      %v826 = vpop.permute.xlu0 %825
      %827 = vrot.lane.b32.xlu0 %v678, 20
      %v828 = vpop.permute.xlu0 %827
      %829 = vrot.lane.b32.xlu0 %v681, 20
      %v830 = vpop.permute.xlu0 %829
      %831 = vrot.lane.b32.xlu0 %v800, 20
      %v832 = vpop.permute.xlu0 %831
      %v835 = vunpack.c.l.b16 %v277
      %v836 = vunpack.c.l.b16 %v278
      %v837 = vpack.c.b16 %v836, %v835
      %838 = vrot.lane.b32.xlu0 %v346, 24
      %v839 = vpop.permute.xlu0 %838
      %840 = vrot.lane.b32.xlu0 %v347, 24
      %v841 = vpop.permute.xlu0 %840
      %842 = vrot.lane.b32.xlu0 %v348, 24
      %v843 = vpop.permute.xlu0 %842
      %844 = vrot.lane.b32.xlu0 %v349, 24
      %v845 = vpop.permute.xlu0 %844
      %846 = vrot.lane.b32.xlu0 %v350, 24
      %v847 = vpop.permute.xlu0 %846
      %848 = vrot.lane.b32.xlu0 %v351, 24
      %v849 = vpop.permute.xlu0 %848
      %850 = vrot.lane.b32.xlu0 %v352, 24
      %v851 = vpop.permute.xlu0 %850
      %852 = vrot.lane.b32.xlu0 %v353, 24
      %v853 = vpop.permute.xlu0 %852
      %854 = vrot.lane.b32.xlu0 %v354, 24
      %v855 = vpop.permute.xlu0 %854
      %856 = vrot.lane.b32.xlu0 %v355, 24
      %v857 = vpop.permute.xlu0 %856
      %858 = vrot.lane.b32.xlu0 %v356, 24
      %v859 = vpop.permute.xlu0 %858
      %860 = vrot.lane.b32.xlu0 %v357, 24
      %v861 = vpop.permute.xlu0 %860
      %862 = vrot.lane.b32.xlu0 %v358, 24
      %v863 = vpop.permute.xlu0 %862
      %864 = vrot.lane.b32.xlu0 %v359, 24
      %v865 = vpop.permute.xlu0 %864
      %866 = vrot.lane.b32.xlu0 %v718, 24
      %v867 = vpop.permute.xlu0 %866
      %868 = vrot.lane.b32.xlu0 %v837, 24
      %v869 = vpop.permute.xlu0 %868
      %v871 = vunpack.c.l.b16 %v279
      %v872 = vpack.c.b16 %v871, %v871
      %v874 = vshrl.u32 %v837, 16
      %v876 = vshll.u32 %v837, 16
      %v878 = vrot.slane %v876, 1
      %v879 = vor.u32 %v874, %v878
      %v881 = vshll.u32 %v872, 16
      %v883 = vrot.slane %v881, 1
      %v884 = vsel %vm408, %v879, %v883
      %885 = vrot.lane.b32.xlu0 %v444, 28
      %v886 = vpop.permute.xlu0 %885
      %887 = vrot.lane.b32.xlu0 %v456, 28
      %v888 = vpop.permute.xlu0 %887
      %889 = vrot.lane.b32.xlu0 %v468, 28
      %v890 = vpop.permute.xlu0 %889
      %891 = vrot.lane.b32.xlu0 %v480, 28
      %v892 = vpop.permute.xlu0 %891
      %893 = vrot.lane.b32.xlu0 %v492, 28
      %v894 = vpop.permute.xlu0 %893
      %895 = vrot.lane.b32.xlu0 %v504, 28
      %v896 = vpop.permute.xlu0 %895
      %897 = vrot.lane.b32.xlu0 %v516, 28
      %v898 = vpop.permute.xlu0 %897
      %899 = vrot.lane.b32.xlu0 %v528, 28
      %v900 = vpop.permute.xlu0 %899
      %901 = vrot.lane.b32.xlu0 %v540, 28
      %v902 = vpop.permute.xlu0 %901
      %903 = vrot.lane.b32.xlu0 %v552, 28
      %v904 = vpop.permute.xlu0 %903
      %905 = vrot.lane.b32.xlu0 %v564, 28
      %v906 = vpop.permute.xlu0 %905
      %907 = vrot.lane.b32.xlu0 %v576, 28
      %v908 = vpop.permute.xlu0 %907
      %909 = vrot.lane.b32.xlu0 %v588, 28
      %v910 = vpop.permute.xlu0 %909
      %911 = vrot.lane.b32.xlu0 %v600, 28
      %v912 = vpop.permute.xlu0 %911
      %913 = vrot.lane.b32.xlu0 %v765, 28
      %v914 = vpop.permute.xlu0 %913
      %915 = vrot.lane.b32.xlu0 %v884, 28
      %v916 = vpop.permute.xlu0 %915
      %v917 = vrot.slane %v837, 1
      %v918 = vrot.slane %v872, 1
      %v919 = vsel %vm633, %v917, %v918
      %920 = vrot.lane.b32.xlu0 %v642, 32
      %v921 = vpop.permute.xlu0 %920
      %922 = vrot.lane.b32.xlu0 %v645, 32
      %v923 = vpop.permute.xlu0 %922
      %924 = vrot.lane.b32.xlu0 %v648, 32
      %v925 = vpop.permute.xlu0 %924
      %926 = vrot.lane.b32.xlu0 %v651, 32
      %v927 = vpop.permute.xlu0 %926
      %928 = vrot.lane.b32.xlu0 %v654, 32
      %v929 = vpop.permute.xlu0 %928
      %930 = vrot.lane.b32.xlu0 %v657, 32
      %v931 = vpop.permute.xlu0 %930
      %932 = vrot.lane.b32.xlu0 %v660, 32
      %v933 = vpop.permute.xlu0 %932
      %934 = vrot.lane.b32.xlu0 %v663, 32
      %v935 = vpop.permute.xlu0 %934
      %936 = vrot.lane.b32.xlu0 %v666, 32
      %v937 = vpop.permute.xlu0 %936
      %938 = vrot.lane.b32.xlu0 %v669, 32
      %v939 = vpop.permute.xlu0 %938
      %940 = vrot.lane.b32.xlu0 %v672, 32
      %v941 = vpop.permute.xlu0 %940
      %942 = vrot.lane.b32.xlu0 %v675, 32
      %v943 = vpop.permute.xlu0 %942
      %944 = vrot.lane.b32.xlu0 %v678, 32
      %v945 = vpop.permute.xlu0 %944
      %946 = vrot.lane.b32.xlu0 %v681, 32
      %v947 = vpop.permute.xlu0 %946
      %948 = vrot.lane.b32.xlu0 %v800, 32
      %v949 = vpop.permute.xlu0 %948
      %950 = vrot.lane.b32.xlu0 %v919, 32
      %v951 = vpop.permute.xlu0 %950
      %vm952 = vcmask 31744
      %v954 = vsel %vm952, %v344, %v602
      %v956 = vsel %vm952, %v345, %v604
      %v958 = vsel %vm952, %v346, %v606
      %v960 = vsel %vm952, %v347, %v608
      %v962 = vsel %vm952, %v348, %v610
      %v964 = vsel %vm952, %v349, %v612
      %v966 = vsel %vm952, %v350, %v614
      %v968 = vsel %vm952, %v351, %v616
      %v970 = vsel %vm952, %v352, %v618
      %v972 = vsel %vm952, %v353, %v620
      %v974 = vsel %vm952, %v354, %v622
      %v976 = vsel %vm952, %v355, %v624
      %v978 = vsel %vm952, %v356, %v626
      %v980 = vsel %vm952, %v357, %v628
      %v982 = vsel %vm952, %v358, %v630
      %v984 = vsel %vm952, %v359, %v632
      %vm985 = vcmask 64512
      %v987 = vsel %vm985, %v954, %v683
      %v989 = vsel %vm985, %v956, %v685
      %v991 = vsel %vm985, %v958, %v687
      %v993 = vsel %vm985, %v960, %v689
      %v995 = vsel %vm985, %v962, %v691
      %v997 = vsel %vm985, %v964, %v693
      %v999 = vsel %vm985, %v966, %v695
      %v1001 = vsel %vm985, %v968, %v697
      %v1003 = vsel %vm985, %v970, %v699
      %v1005 = vsel %vm985, %v972, %v701
      %v1007 = vsel %vm985, %v974, %v703
      %v1009 = vsel %vm985, %v976, %v705
      %v1011 = vsel %vm985, %v978, %v707
      %v1013 = vsel %vm985, %v980, %v709
      %v1015 = vsel %vm985, %v982, %v711
      %v1017 = vsel %vm985, %v984, %v713
      %vm1018 = vcmask 97280
      %v1020 = vsel %vm1018, %v987, %v720
      %v1022 = vsel %vm1018, %v989, %v722
      %v1024 = vsel %vm1018, %v991, %v724
      %v1026 = vsel %vm1018, %v993, %v726
      %v1028 = vsel %vm1018, %v995, %v728
      %v1030 = vsel %vm1018, %v997, %v730
      %v1032 = vsel %vm1018, %v999, %v732
      %v1034 = vsel %vm1018, %v1001, %v734
      %v1036 = vsel %vm1018, %v1003, %v736
      %v1038 = vsel %vm1018, %v1005, %v738
      %v1040 = vsel %vm1018, %v1007, %v740
      %v1042 = vsel %vm1018, %v1009, %v742
      %v1044 = vsel %vm1018, %v1011, %v744
      %v1046 = vsel %vm1018, %v1013, %v746
      %v1048 = vsel %vm1018, %v1015, %v748
      %v1050 = vsel %vm1018, %v1017, %v750
      %vm1051 = vcmask 130048
      %v1053 = vsel %vm1051, %v1020, %v767
      %v1055 = vsel %vm1051, %v1022, %v769
      %v1057 = vsel %vm1051, %v1024, %v771
      %v1059 = vsel %vm1051, %v1026, %v773
      %v1061 = vsel %vm1051, %v1028, %v775
      %v1063 = vsel %vm1051, %v1030, %v777
      %v1065 = vsel %vm1051, %v1032, %v779
      %v1067 = vsel %vm1051, %v1034, %v781
      %v1069 = vsel %vm1051, %v1036, %v783
      %v1071 = vsel %vm1051, %v1038, %v785
      %v1073 = vsel %vm1051, %v1040, %v787
      %v1075 = vsel %vm1051, %v1042, %v789
      %v1077 = vsel %vm1051, %v1044, %v791
      %v1079 = vsel %vm1051, %v1046, %v793
      %v1081 = vsel %vm1051, %v1048, %v795
      %v1083 = vsel %vm1051, %v1050, %v797
      %vm1084 = vcmask 162816
      %v1086 = vsel %vm1084, %v1053, %v802
      %v1088 = vsel %vm1084, %v1055, %v804
      %v1090 = vsel %vm1084, %v1057, %v806
      %v1092 = vsel %vm1084, %v1059, %v808
      %v1094 = vsel %vm1084, %v1061, %v810
      %v1096 = vsel %vm1084, %v1063, %v812
      %v1098 = vsel %vm1084, %v1065, %v814
      %v1100 = vsel %vm1084, %v1067, %v816
      %v1102 = vsel %vm1084, %v1069, %v818
      %v1104 = vsel %vm1084, %v1071, %v820
      %v1106 = vsel %vm1084, %v1073, %v822
      %v1108 = vsel %vm1084, %v1075, %v824
      %v1110 = vsel %vm1084, %v1077, %v826
      %v1112 = vsel %vm1084, %v1079, %v828
      %v1114 = vsel %vm1084, %v1081, %v830
      %v1116 = vsel %vm1084, %v1083, %v832
      %vm1117 = vcmask 195584
      %v1119 = vsel %vm1117, %v1086, %v839
      %v1121 = vsel %vm1117, %v1088, %v841
      %v1123 = vsel %vm1117, %v1090, %v843
      %v1125 = vsel %vm1117, %v1092, %v845
      %v1127 = vsel %vm1117, %v1094, %v847
      %v1129 = vsel %vm1117, %v1096, %v849
      %v1131 = vsel %vm1117, %v1098, %v851
      %v1133 = vsel %vm1117, %v1100, %v853
      %v1135 = vsel %vm1117, %v1102, %v855
      %v1137 = vsel %vm1117, %v1104, %v857
      %v1139 = vsel %vm1117, %v1106, %v859
      %v1141 = vsel %vm1117, %v1108, %v861
      %v1143 = vsel %vm1117, %v1110, %v863
      %v1145 = vsel %vm1117, %v1112, %v865
      %v1147 = vsel %vm1117, %v1114, %v867
      %v1149 = vsel %vm1117, %v1116, %v869
      %vm1150 = vcmask 228352
      %v1152 = vsel %vm1150, %v1119, %v886
      %v1154 = vsel %vm1150, %v1121, %v888
      %v1156 = vsel %vm1150, %v1123, %v890
      %v1158 = vsel %vm1150, %v1125, %v892
      %v1160 = vsel %vm1150, %v1127, %v894
      %v1162 = vsel %vm1150, %v1129, %v896
      %v1164 = vsel %vm1150, %v1131, %v898
      %v1166 = vsel %vm1150, %v1133, %v900
      %v1168 = vsel %vm1150, %v1135, %v902
      %v1170 = vsel %vm1150, %v1137, %v904
      %v1172 = vsel %vm1150, %v1139, %v906
      %v1174 = vsel %vm1150, %v1141, %v908
      %v1176 = vsel %vm1150, %v1143, %v910
      %v1178 = vsel %vm1150, %v1145, %v912
      %v1180 = vsel %vm1150, %v1147, %v914
      %v1182 = vsel %vm1150, %v1149, %v916
      %vm1183 = vcmask 261120
      %v1185 = vsel %vm1183, %v1152, %v921
      %v1187 = vsel %vm1183, %v1154, %v923
      %v1189 = vsel %vm1183, %v1156, %v925
      %v1191 = vsel %vm1183, %v1158, %v927
      %v1193 = vsel %vm1183, %v1160, %v929
      %v1195 = vsel %vm1183, %v1162, %v931
      %v1197 = vsel %vm1183, %v1164, %v933
      %v1199 = vsel %vm1183, %v1166, %v935
      %v1201 = vsel %vm1183, %v1168, %v937
      %v1203 = vsel %vm1183, %v1170, %v939
      %v1205 = vsel %vm1183, %v1172, %v941
      %v1207 = vsel %vm1183, %v1174, %v943
      %v1209 = vsel %vm1183, %v1176, %v945
      %v1211 = vsel %vm1183, %v1178, %v947
      %v1213 = vsel %vm1183, %v1180, %v949
      %v1215 = vsel %vm1183, %v1182, %v951
      %v1216 = vld [vmem:[%s1] sm:$0xf]
      %v1217 = vld [vmem:[%s1 + $0x4] sm:$0xf]
      %v1218 = vld [vmem:[%s2] sm:$0xff]
      %v1219 = vld [vmem:[%s2 + $0x8] sm:$0xff]
      %1221 = vset.pattern.permute.xlu0 0
      %1222 = vperm.xlu0 %1221, %v1218
      %v1223 = vpop.permute.xlu0 %1222
      %1226 = vset.pattern.permute.xlu0 0
      %1227 = vperm.xlu0 %1226, %v1219
      %v1228 = vpop.permute.xlu0 %1227
      %v1232 = vunpack.c.l.b16 %v1216
      %v1233 = vunpack.c.l.b16 %v1217
      %v1234 = vpack.c.b16 %v1233, %v1232
      %vm1235 = vcmask 293888
      %v1237 = vsel %vm1235, %v1234, 0
      %v1239 = vsel %vm1235, %v1185, 0
      %v1241 = vsel %vm1235, %v1187, 0
      %v1243 = vsel %vm1235, %v1189, 0
      %v1245 = vsel %vm1235, %v1191, 0
      %v1247 = vsel %vm1235, %v1193, 0
      %v1249 = vsel %vm1235, %v1195, 0
      %v1251 = vsel %vm1235, %v1197, 0
      %v1253 = vsel %vm1235, %v1199, 0
      %v1255 = vsel %vm1235, %v1201, 0
      %v1257 = vsel %vm1235, %v1203, 0
      %v1259 = vsel %vm1235, %v1205, 0
      %v1261 = vsel %vm1235, %v1207, 0
      %v1263 = vsel %vm1235, %v1209, 0
      %v1265 = vsel %vm1235, %v1211, 0
      %v1267 = vsel %vm1235, %v1213, 0
      %v1269 = vsel %vm1235, %v1215, 0
      %1271 = vmatprep.subr.bf16.mxu0 0
      %1272 = vmatpush1.bf16.xpose.msra.mxu0 %v1239
      %1273 = vmatprep.subr.bf16.mxu0 0
      %1274 = vmatpush1.bf16.xpose.msra.mxu0 %v1241
      %1275 = vmatprep.subr.bf16.mxu0 0
      %1276 = vmatpush1.bf16.xpose.msra.mxu0 %v1243
      %1277 = vmatprep.subr.bf16.mxu0 0
      %1278 = vmatpush1.bf16.xpose.msra.mxu0 %v1245
      %1279 = vmatprep.subr.bf16.mxu0 0
      %1280 = vmatpush1.bf16.xpose.msra.mxu0 %v1247
      %1281 = vmatprep.subr.bf16.mxu0 0
      %1282 = vmatpush1.bf16.xpose.msra.mxu0 %v1249
      %1283 = vmatprep.subr.bf16.mxu0 0
      %1284 = vmatpush1.bf16.xpose.msra.mxu0 %v1251
      %1285 = vmatprep.subr.bf16.mxu0 0
      %1286 = vmatpush1.bf16.xpose.msra.mxu0 %v1253
      %1287 = vmatprep.subr.bf16.mxu0 0
      %1288 = vmatpush1.bf16.xpose.msra.mxu0 %v1255
      %1289 = vmatprep.subr.bf16.mxu0 0
      %1290 = vmatpush1.bf16.xpose.msra.mxu0 %v1257
      %1291 = vmatprep.subr.bf16.mxu0 0
      %1292 = vmatpush1.bf16.xpose.msra.mxu0 %v1259
      %1293 = vmatprep.subr.bf16.mxu0 0
      %1294 = vmatpush1.bf16.xpose.msra.mxu0 %v1261
      %1295 = vmatprep.subr.bf16.mxu0 0
      %1296 = vmatpush1.bf16.xpose.msra.mxu0 %v1263
      %1297 = vmatprep.subr.bf16.mxu0 0
      %1298 = vmatpush1.bf16.xpose.msra.mxu0 %v1265
      %1299 = vmatprep.subr.bf16.mxu0 0
      %1300 = vmatpush1.bf16.xpose.msra.mxu0 %v1267
      %1301 = vmatprep.subr.bf16.mxu0 0
      %1302 = vmatpush1.bf16.xpose.msra.mxu0 %v1269
      %1303 = vmatprep.mubr.bf16.mxu0 0
      %1304 = vmatmul.mubr.bf16.gmra.mrb[0].mxu0 %v1237
      %v1305 = vpop.f32.mrb[0].mxu0
      %v1306 = vadd.f32 %v1223, %v1305
      %v1307 = vpop.f32.mrb[0].mxu0
      %v1308 = vadd.f32 %v1223, %v1307
      %v1309 = vpop.f32.mrb[0].mxu0
      %v1310 = vadd.f32 %v1228, %v1309
      %v1311 = vpop.f32.mrb[0].mxu0
      %v1312 = vadd.f32 %v1228, %v1311
      %1313 = vdwg.mxu0
      %v1314 = vmax.f32 %v1306, 0.0
      %v1315 = vmax.f32 %v1308, 0.0
      %v1316 = vmax.f32 %v1310, 0.0
      %v1317 = vmax.f32 %v1312, 0.0
      %v1318 = vpack.c.bf16 %v1316, %v1314
      %v1319 = vpack.c.bf16 %v1317, %v1315
      %v1320 = vld [vmem:[%s3] sm:$0xf]
      %v1321 = vld [vmem:[%s4] sm:$0xff]
      %1323 = vset.pattern.permute.xlu0 0
      %1324 = vperm.xlu0 %1323, %v1321
      %v1325 = vpop.permute.xlu0 %1324
      %v1328 = vsel %vm1051, %v1320, 0
      %1330 = vmatprep.subr.bf16.mxu0 %v1319
      %1331 = vmatpush1.bf16.msra.mxu0 %v1318
      %1332 = vmatprep.subr.bf16.mxu0 0
      %1333 = vmatpush1.bf16.msra.mxu0 0
      %1334 = vmatprep.subr.bf16.mxu0 0
      %1335 = vmatpush1.bf16.msra.mxu0 0
      %1336 = vmatprep.subr.bf16.mxu0 0
      %1337 = vmatpush1.bf16.msra.mxu0 0
      %1338 = vmatprep.subr.bf16.mxu0 0
      %1339 = vmatpush1.bf16.msra.mxu0 0
      %1340 = vmatprep.subr.bf16.mxu0 0
      %1341 = vmatpush1.bf16.msra.mxu0 0
      %1342 = vmatprep.subr.bf16.mxu0 0
      %1343 = vmatpush1.bf16.msra.mxu0 0
      %1344 = vmatprep.subr.bf16.mxu0 0
      %1345 = vmatpush1.bf16.msra.mxu0 0
      %1346 = vmatprep.subr.bf16.mxu0 0
      %1347 = vmatpush1.bf16.msra.mxu0 0
      %1348 = vmatprep.subr.bf16.mxu0 0
      %1349 = vmatpush1.bf16.msra.mxu0 0
      %1350 = vmatprep.subr.bf16.mxu0 0
      %1351 = vmatpush1.bf16.msra.mxu0 0
      %1352 = vmatprep.subr.bf16.mxu0 0
      %1353 = vmatpush1.bf16.msra.mxu0 0
      %1354 = vmatprep.subr.bf16.mxu0 0
      %1355 = vmatpush1.bf16.msra.mxu0 0
      %1356 = vmatprep.subr.bf16.mxu0 0
      %1357 = vmatpush1.bf16.msra.mxu0 0
      %1358 = vmatprep.subr.bf16.mxu0 0
      %1359 = vmatpush1.bf16.msra.mxu0 0
      %1360 = vmatprep.subr.bf16.mxu0 0
      %1361 = vmatpush1.bf16.msra.mxu0 0
      %1362 = vmatprep.mubr.bf16.mxu0 0
      %1363 = vmatmul.mubr.bf16.gmra.mrb[0].mxu0 %v1328
      %v1364 = vpop.f32.mrb[0].mxu0
      %v1365 = vadd.f32 %v1325, %v1364
      %v1366 = vpop.f32.mrb[0].mxu0
      %v1367 = vadd.f32 %v1325, %v1366
      %v1368 = vpop.f32.mrb[0].mxu0
      %v1369 = vpop.f32.mrb[0].mxu0
      %1370 = vdwg.mxu0
      %v1371 = vmax.f32 %v1365, 0.0
      %v1372 = vmax.f32 %v1367, 0.0
      %1373 = vst [vmem:[%s224] sm:$0xff] %v1371
      %1374 = vst [vmem:[%s224 + $0x8] sm:$0xff] %v1372
      %p1375 = scmp.lt.s32.totalorder %s16, 1
      %s1376 = scalar_select %p1375, %s16, 1
      %s1377 = smul.addr %s1376, 2
      %s1378 = smul.addr %s1377, 8
      %s1379 = scalar_lea.vmem %s5, %s1378
      // Predicated region
      $region41: #{unit_forward.1} parent=39 // pred_check
        %p1380 = pneg %p144
      $region42: #{unit_forward.1} parent=39 // pred_check_branch
        %1382 = sbr.rel (%p1380) target = $region44
      $region43: #{unit_forward.1} parent=39 // pred_region
        _
      $region44: #{unit_forward.1} parent=39 // pred_fallthru
        _
    $region40: #{unit_forward.1} parent=5 // pred_fallthru
      _
    %p1383 = scmp.le.s32.totalorder 2, %s11
    // Predicated region
    $region45: #{unit_forward.1} parent=5 // pred_check
      %p1384 = pneg %p1383
    $region46: #{unit_forward.1} parent=5 // pred_check_branch
      %1386 = sbr.rel (%p1384) target = $region48
    $region47: #{unit_forward.1} parent=5 // pred_region
      %s1387 = ssub.s32 %s11, 2
      // Predicated region
      $region49: #{unit_forward.1} parent=47 // pred_check
        %p1388 = pneg %p150
      $region50: #{unit_forward.1} parent=47 // pred_check_branch
        %1390 = sbr.rel (%p1388) target = $region52
      $region51: #{unit_forward.1} parent=47 // pred_region
        %p1391 = scmp.lt.s32.totalorder %s17, 1
        %s1392 = scalar_select %p1391, %s17, 1
        %s1393 = smul.addr %s1392, 2
        %s1394 = smul.addr %s1393, 8
        %s1395 = scalar_lea.vmem %s5, %s1394
      $region52: #{unit_forward.1} parent=47 // pred_fallthru
        _
    $region48: #{unit_forward.1} parent=5 // pred_fallthru
      _
  $region6: #{unit_forward.1} parent=0 // loop_footer
    %s15 = sadd.s32 1, %s11
  $region7: #{unit_forward.1} parent=0 // loop_footer_branch
    %10 = sbr.rel target = $region3
  $region8: #{unit_forward.1} parent=0 // loop_exit
    _

</llo_original>
